<compile_context>
chip_gen: v5e
topology: v5e:2x2
jax: 0.10.0
libtpu: 0.0.40
codegen_flags: <defaults>
</compile_context>

<pallas_src>
import functools

import jax
import jax.numpy as jnp
from jax.experimental import pallas as pl
from jax.experimental.pallas import tpu as pltpu

_LANES = 128
_SUBLANES = 8
_DEFAULT_TILE_ROWS = 8192       # 8192 * 128 * 4 B = 4 MiB per f32 input per buffer
_VMEM_LIMIT_BYTES = 48 * 1024 * 1024


def _l1_kernel(o_ref, t_ref, psum_ref, *, valid_rows, tile_rows, mask_tail):
    # o_ref / t_ref: (tile_rows, 128) lane-dense block in VMEM (possibly a partial
    # boundary block whose out-of-range rows contain garbage -> masked below).
    # psum_ref: (1, 8, 128) per-tile partial-sum slab.
    a = o_ref[...].astype(jnp.float32)
    b = t_ref[...].astype(jnp.float32)
    absdiff = jnp.abs(a - b)

    if mask_tail:  # static: only emitted when rows % tile_rows != 0
        base = pl.program_id(0) * tile_rows
        row_ids = jax.lax.broadcasted_iota(jnp.int32, (tile_rows, _LANES), 0)
        absdiff = jnp.where(base + row_ids < valid_rows, absdiff, 0.0)

    # (tile_rows, 128) -> (tile_rows//8, 8, 128) matches native f32 vreg tiling, so the
    # reshape is layout-free; the axis-0 sum is cross-vreg VPU adds only (no XLU).
    partial = jnp.sum(
        absdiff.reshape(tile_rows // _SUBLANES, _SUBLANES, _LANES), axis=0
    )
    psum_ref[...] = partial.reshape(1, _SUBLANES, _LANES)


def _row_unit(dtype) -> int:
    # Sublane-packing-safe row granularity: 8 for 4-byte, 16 for 2-byte, 32 for 1-byte.
    itemsize = jnp.dtype(dtype).itemsize
    return max(_SUBLANES, (8 * 4) // max(1, itemsize))


def l1_loss(output, target, *, tile_rows=_DEFAULT_TILE_ROWS):
    """Pallas equivalent of L1().forward(output, target): mean |output - target|."""
    assert output.shape == target.shape
    total = int(output.size)
    assert total > 0

    # Flatten: metadata-only for contiguous (default-layout) arrays.
    flat_o = output.reshape(-1)
    flat_t = target.reshape(-1)

    unit = max(_row_unit(output.dtype), _row_unit(target.dtype))
    rows = total // _LANES
    rem = total - rows * _LANES  # sub-128 lane tail

    if rows < unit:
        # Tiny input (< unit*128 elements): a kernel launch isn't worth it.
        diff = flat_o.astype(jnp.float32) - flat_t.astype(jnp.float32)
        return (jnp.sum(jnp.abs(diff)) / jnp.float32(total)).astype(jnp.float32)

    tile_rows = min(tile_rows, (rows // unit) * unit)  # multiple of `unit`, <= rows
    num_tiles = pl.cdiv(rows, tile_rows)
    mask_tail = (rows % tile_rows) != 0  # last block is partial -> in-kernel masking

    if rem == 0:
        # Aligned fast path: pure metadata reshape, zero extra HBM traffic.
        main_o = flat_o.reshape(rows, _LANES)
        main_t = flat_t.reshape(rows, _LANES)
        tail_sum = jnp.float32(0.0)
    else:
        # Lane-unaligned total: slice off the <128-element tail and handle it in JAX.
        # (Only this rare case pays for a prefix materialization; aligned NN shapes
        #  stay zero-copy.)
        main_o = flat_o[: rows * _LANES].reshape(rows, _LANES)
        main_t = flat_t[: rows * _LANES].reshape(rows, _LANES)
        tail_o = flat_o[rows * _LANES:].astype(jnp.float32)
        tail_t = flat_t[rows * _LANES:].astype(jnp.float32)
        tail_sum = jnp.sum(jnp.abs(tail_o - tail_t))

    kernel = functools.partial(
        _l1_kernel, valid_rows=rows, tile_rows=tile_rows, mask_tail=mask_tail
    )

    in_spec = pl.BlockSpec((tile_rows, _LANES), lambda i: (i, 0))
    out_spec = pl.BlockSpec((1, _SUBLANES, _LANES), lambda i: (i, 0, 0))

    psums = pl.pallas_call(
        kernel,
        out_shape=jax.ShapeDtypeStruct((num_tiles, _SUBLANES, _LANES), jnp.float32),
        grid_spec=pltpu.PrefetchScalarGridSpec(
            num_scalar_prefetch=0,
            grid=(num_tiles,),
            in_specs=[in_spec, in_spec],
            out_specs=out_spec,
        ),
        compiler_params=pltpu.CompilerParams(
            dimension_semantics=("parallel",),  # independent tiles -> dual-TC on v7x
            vmem_limit_bytes=_VMEM_LIMIT_BYTES,
        ),
    )(main_o, main_t)

    # Final reduction + mean over the TRUE (unpadded) element count.
    # TODO(synk): for high-rate small-tensor calls, fold this tiny XLA reduce into the
    # kernel output path; negligible for large inputs.
    return ((jnp.sum(psums) + tail_sum) / jnp.float32(total)).astype(jnp.float32)


if __name__ == "__main__":
    key = jax.random.PRNGKey(0)
    k1, k2 = jax.random.split(key)
    N, C, H, W = 2, 4, 16, 16
    output = jax.random.normal(k1, (N, C, H, W), dtype=jnp.float32)
    target = jax.random.normal(k2, (N, C, H, W), dtype=jnp.float32)

    loss = l1_loss(output, target)
    jax.block_until_ready(loss)

    # Reference: same math as torch.abs(output - target).mean()
    ref = jnp.mean(jnp.abs(output - target))
    assert jnp.allclose(loss, ref, rtol=1e-5, atol=1e-6), (loss, ref)

    print("KERNEL_OK")
</pallas_src>

<mosaic_0001>
module attributes {stable_mosaic.version = 11 : i64} {
  func.func @_l1_kernel(%arg0: i32, %arg1: memref<16x128xf32, #tpu.memory_space<vmem>>, %arg2: memref<16x128xf32, #tpu.memory_space<vmem>>, %arg3: memref<1x8x128xf32, #tpu.memory_space<vmem>>) attributes {dimension_semantics = [#tpu.dimension_semantics<parallel>], iteration_bounds = array<i64: 1>, scalar_prefetch = 0 : i64, scratch_operands = 0 : i64, tpu.core_type = #tpu.core_type<tc>, window_params = [{transform_indices = @transform_0, window_bounds = array<i64: 16, 128>}, {transform_indices = @transform_1, window_bounds = array<i64: 16, 128>}, {transform_indices = @transform_2, window_bounds = array<i64: 1, 8, 128>}]} {
    %c0 = arith.constant 0 : index
    %c0_0 = arith.constant 0 : index
    %0 = vector.load %arg1[%c0, %c0_0] : memref<16x128xf32, #tpu.memory_space<vmem>>, vector<16x128xf32>
    %c0_1 = arith.constant 0 : index
    %c0_2 = arith.constant 0 : index
    %1 = vector.load %arg2[%c0_1, %c0_2] : memref<16x128xf32, #tpu.memory_space<vmem>>, vector<16x128xf32>
    %2 = arith.subf %0, %1 : vector<16x128xf32>
    %3 = math.absf %2 : vector<16x128xf32>
    %4 = vector.shape_cast %3 : vector<16x128xf32> to vector<2x8x128xf32>
    %cst = arith.constant dense<0.000000e+00> : vector<8x128xf32>
    %5 = vector.multi_reduction <add>, %4, %cst [0] : vector<2x8x128xf32> to vector<8x128xf32>
    %6 = vector.shape_cast %5 : vector<8x128xf32> to vector<1x8x128xf32>
    %c0_3 = arith.constant 0 : index
    %c0_4 = arith.constant 0 : index
    %c0_5 = arith.constant 0 : index
    %7 = vector.load %arg3[%c0_3, %c0_4, %c0_5] : memref<1x8x128xf32, #tpu.memory_space<vmem>>, vector<1x8x128xf32>
    tpu.vector_store %arg3[%c0_3, %c0_4, %c0_5], %6 {strides = array<i32>} : memref<1x8x128xf32, #tpu.memory_space<vmem>>, vector<1x8x128xf32>,
    return
  }
  func.func @transform_0(%arg0: i32) -> (i32, i32) {
    %c0_i32 = arith.constant 0 : i32
    %c0_i32_0 = arith.constant 0 : i32
    return %arg0, %c0_i32 : i32, i32
  }
  func.func @transform_1(%arg0: i32) -> (i32, i32) {
    %c0_i32 = arith.constant 0 : i32
    %c0_i32_0 = arith.constant 0 : i32
    return %arg0, %c0_i32 : i32, i32
  }
  func.func @transform_2(%arg0: i32) -> (i32, i32, i32) {
    %c0_i32 = arith.constant 0 : i32
    %c0_i32_0 = arith.constant 0 : i32
    %c0_i32_1 = arith.constant 0 : i32
    return %arg0, %c0_i32, %c0_i32_0 : i32, i32, i32
  }
}

</mosaic_0001>

<llo_original>
// kernel: tpu_custom_call.1
$region0: #{tpu_custom_call.1}
  #allocation0 [shape = 'u32[]', space=smem, size = 0x4, offset = 0x4, fixed_abs, tag = 'smem constant byte address 0x4 - core index']
  #allocation1 [shape = 'u32[72,128]{1,0:T(1,128)}', space=vmem, size = 0x9000, scoped, tag = 'internal scratch']
  %s0 = inlined_call_operand.hbm [shape: f32[16,128], index: 0, kind: input, shape index: {}]
  %s1 = inlined_call_operand.hbm [shape: f32[16,128], index: 1, kind: input, shape index: {}]
  %s2 = inlined_call_operand.hbm [shape: f32[1,8,128], index: 2, kind: output, shape index: {}]
  %s3 = sld [smem:[#allocation0]]
  $region26: #{tpu_custom_call.1} parent=0
    _
  %s5 = ssub.s32 1, %s3
  %s6 = scalar_select 0, %s5, %s3
  $region1: #{tpu_custom_call.1} parent=0
    #allocation2 [shape = 'u8[8192]{0}', space=vmem, size = 0x2000, scoped, tag = 'input window, operand 0, single buffered']
    #allocation3 [shape = 's32[1]{0}', space=sflag, size = 0x4, scoped, tag = 'scoped memory for tpu_custom_call.1']
    #allocation4 [shape = 's32[1]{0}', space=sflag, size = 0x4, scoped, tag = 'scoped memory for tpu_custom_call.1']
    #allocation5 [shape = 'u8[8192]{0}', space=vmem, size = 0x2000, scoped, tag = 'input window, operand 1, single buffered']
    #allocation6 [shape = 's32[1]{0}', space=sflag, size = 0x4, scoped, tag = 'scoped memory for tpu_custom_call.1']
    #allocation7 [shape = 'u8[4096]{0}', space=vmem, size = 0x1000, scoped, tag = 'output window, operand 0, single buffered']
    %7 = vsyncpa [#allocation3], 0
    %8 = vsyncpa [#allocation6], 0
    %9 = vsyncpa [#allocation4], 0
    // Predicated region
    $region2: #{tpu_custom_call.1} parent=1 // pred_check
      _
    $region3: #{tpu_custom_call.1} parent=1 // pred_check_branch
      %11 = sbr.rel (0) target = $region5
    $region4: #{tpu_custom_call.1} parent=1 // pred_region
      %13 = vsyncadd [#allocation3], 0
      %s14 = sshll.u32 %s0, 4
      %s15 = int_to_ptr.hbm [resolvable:$true] %s14
      %s16 = sshll.u32 [#allocation2], 4
      %s17 = int_to_ptr.vmem [resolvable:$true] %s16
      %22 = dma.hbm_to_vmem [thread:$0]  %s15, 256, %s17, [#allocation3], 128, 128, 8
    $region5: #{tpu_custom_call.1} parent=1 // pred_fallthru
      _
    // Predicated region
    $region6: #{tpu_custom_call.1} parent=1 // pred_check
      _
    $region7: #{tpu_custom_call.1} parent=1 // pred_check_branch
      %24 = sbr.rel (0) target = $region9
    $region8: #{tpu_custom_call.1} parent=1 // pred_region
      %26 = vsyncadd [#allocation6], 0
      %s27 = sshll.u32 %s1, 4
      %s28 = int_to_ptr.hbm [resolvable:$true] %s27
      %s29 = sshll.u32 [#allocation5], 4
      %s30 = int_to_ptr.vmem [resolvable:$true] %s29
      %35 = dma.hbm_to_vmem [thread:$0]  %s28, 256, %s30, [#allocation6], 128, 128, 8
    $region9: #{tpu_custom_call.1} parent=1 // pred_fallthru
      _
    // Predicated region
    $region10: #{tpu_custom_call.1} parent=1 // pred_check
      _
    $region11: #{tpu_custom_call.1} parent=1 // pred_check_branch
      %37 = sbr.rel (0) target = $region13
    $region12: #{tpu_custom_call.1} parent=1 // pred_region
      %39 = dma.done [#allocation3], 256
    $region13: #{tpu_custom_call.1} parent=1 // pred_fallthru
      _
    // Predicated region
    $region14: #{tpu_custom_call.1} parent=1 // pred_check
      _
    $region15: #{tpu_custom_call.1} parent=1 // pred_check_branch
      %41 = sbr.rel (0) target = $region17
    $region16: #{tpu_custom_call.1} parent=1 // pred_region
      %43 = dma.done [#allocation6], 256
    $region17: #{tpu_custom_call.1} parent=1 // pred_fallthru
      _
    %v44 = vld [vmem:[#allocation2] sm:$0xff]
    %v45 = vld [vmem:[#allocation2 + $0x8] sm:$0xff]
    %v46 = vld [vmem:[#allocation5] sm:$0xff]
    %v47 = vld [vmem:[#allocation5 + $0x8] sm:$0xff]
    %v48 = vsub.f32 %v44, %v46
    %v49 = vsub.f32 %v45, %v47
    %v50 = vand.u32 2147483647, %v48
    %v51 = vand.u32 2147483647, %v49
    %v52 = vadd.f32 %v50, %v51
    %53 = vst [vmem:[#allocation7] sm:$0xff] %v52
    // Predicated region
    $region18: #{tpu_custom_call.1} parent=1 // pred_check
      _
    $region19: #{tpu_custom_call.1} parent=1 // pred_check_branch
      %55 = sbr.rel (0) target = $region21
    $region20: #{tpu_custom_call.1} parent=1 // pred_region
      %57 = vsyncadd [#allocation4], 0
      %s59 = sshll.u32 [#allocation7], 4
      %s60 = int_to_ptr.vmem [resolvable:$true] %s59
      %s61 = sshll.u32 %s2, 4
      %s62 = int_to_ptr.hbm [resolvable:$true] %s61
      %64 = dma.vmem_to_hbm [thread:$0]  %s60, 128, %s62, [#allocation4]
    $region21: #{tpu_custom_call.1} parent=1 // pred_fallthru
      _
    // Predicated region
    $region22: #{tpu_custom_call.1} parent=1 // pred_check
      _
    $region23: #{tpu_custom_call.1} parent=1 // pred_check_branch
      %66 = sbr.rel (0) target = $region25
    $region24: #{tpu_custom_call.1} parent=1 // pred_region
      %68 = dma.done [#allocation4], 128
    $region25: #{tpu_custom_call.1} parent=1 // pred_fallthru
      _
    %69 = vsyncpa [#allocation3], 1
    %70 = vsyncpa [#allocation6], 1
    %71 = vsyncpa [#allocation4], 1

</llo_original>
